<compile_context>
chip_gen: v5e
topology: v5e:2x2
jax: 0.10.0
libtpu: 0.0.40
codegen_flags: <defaults>
</compile_context>

<pallas_src>
import jax
import jax.numpy as jnp
from jax.experimental import pallas as pl
from jax.experimental.pallas import tpu as pltpu


# ----------------------------- tile selection ---------------------------------------

def _pick_tile(total, bytes_per_col, budget_bytes):
    """Largest multiple-of-128 divisor of `total` whose double-buffered streamed
    blocks fit `budget_bytes`.  Falls back to the full extent, which is always a
    legal block shape (block dim == array dim)."""
    best = None
    t = 128
    while t <= total:
        if total % t == 0 and 2 * t * bytes_per_col <= budget_bytes:
            best = t
        t += 128
    return best if best is not None else total


# ----------------------------- fused kernel -----------------------------------------

def _fused_prefix_mlp_kernel(wte_ref, w1_ref, b1_ref, w2_ref, b2_ref, out_ref, h_ref):
    # wte (P, D), w1 (D, BN), b1 (1, BN): constant index_maps -> fetched once, resident.
    # w2 (BN, TN), b2 (1, TN), out (P, TN): streamed / double-buffered along grid axis j.
    # h_ref (P, BN) f32 scratch: persists across grid steps.

    @pl.when(pl.program_id(0) == 0)
    def _():
        # Stage 1 (exactly once): h = tanh(wte @ w1 + b1), kept in VMEM, never HBM.
        acc = jnp.dot(wte_ref[...], w1_ref[...], preferred_element_type=jnp.float32)
        h_ref[...] = jnp.tanh(acc + b1_ref[...].astype(jnp.float32))

    # Stage 2 (every output tile): out_tile = h @ w2_tile + b2_tile.
    acc = jnp.dot(h_ref[...], w2_ref[...], preferred_element_type=jnp.float32)
    out_ref[...] = (acc + b2_ref[...].astype(jnp.float32)).astype(out_ref.dtype)


def prefix_mlp_pallas(wte, w1, b1, w2, b2, *, out_dtype=jnp.float32,
                      vmem_limit_bytes=48 * 1024 * 1024):
    """control_trans MLP over the full prefix embedding table -> (P, n_layers*2*D)."""
    P, D = wte.shape
    BN = w1.shape[1]
    OUT = w2.shape[1]
    assert w2.shape[0] == BN and b1.shape == (BN,) and b2.shape == (OUT,)

    b1_2d = b1.reshape(1, BN)
    b2_2d = b2.reshape(1, OUT)

    f32 = 4
    # Bytes that stay live in VMEM for the whole stream (count the resident inputs as
    # double-buffered to be conservative) + the h scratch.
    resident_bytes = (2 * (P * D + D * BN + BN) + P * BN) * f32
    stream_budget = max(vmem_limit_bytes - resident_bytes - (8 << 20), 4 << 20)
    # Per streamed output column: one w2 column + one bias element + one output column.
    col_bytes = (BN * w2.dtype.itemsize + b2.dtype.itemsize
                 + P * jnp.dtype(out_dtype).itemsize)
    tn = _pick_tile(OUT, col_bytes, stream_budget)

    kv = pl.pallas_call(
        _fused_prefix_mlp_kernel,
        out_shape=jax.ShapeDtypeStruct((P, OUT), out_dtype),
        grid=(OUT // tn,),
        in_specs=[
            pl.BlockSpec((P, D), lambda j: (0, 0)),     # wte : resident
            pl.BlockSpec((D, BN), lambda j: (0, 0)),    # w1  : resident
            pl.BlockSpec((1, BN), lambda j: (0, 0)),    # b1  : resident
            pl.BlockSpec((BN, tn), lambda j: (0, j)),   # w2  : streamed (hot)
            pl.BlockSpec((1, tn), lambda j: (0, j)),    # b2  : streamed
        ],
        out_specs=pl.BlockSpec((P, tn), lambda j: (0, j)),   # lane-dense (tn % 128 == 0)
        scratch_shapes=[pltpu.VMEM((P, BN), jnp.float32)],   # h, persists across steps
        compiler_params=pltpu.CompilerParams(
            dimension_semantics=("arbitrary",),   # scratch init at j==0 -> sequential
            vmem_limit_bytes=vmem_limit_bytes,
        ),
    )(wte, w1, b1_2d, w2, b2_2d)
    return kv


# ----------------------------- module forward ----------------------------------------

def prefix_tuning_forward(batch_size, params, n_layers, n_heads, input_size,
                          prefix_length):
    """Full PrefixTuning.forward semantics (eval mode: dropout = identity)."""
    n_embd_per_head = input_size // n_heads

    # Hot path: embedding table -> fused MLP -> (P, n_layers*2*D)
    kv_flat = prefix_mlp_pallas(
        params["wte"], params["w1"], params["b1"], params["w2"], params["b2"]
    )

    # Glue: reorder the SINGLE (P, OUT) slab once, then broadcast over batch.
    # Equivalent to view(B, P, L*2, H, dh).permute(2, 0, 3, 1, 4) because kv is
    # identical for every batch element (arange tokens -> same embeddings).
    kv = kv_flat.reshape(prefix_length, n_layers * 2, n_heads, n_embd_per_head)
    kv = jnp.transpose(kv, (1, 2, 0, 3))                  # (n_layers*2, H, P, d_head)
    # TODO(synk): nn.Dropout is identity in eval mode; training-mode dropout not implemented.
    kv = jnp.broadcast_to(
        kv[:, None],
        (n_layers * 2, batch_size, n_heads, prefix_length, n_embd_per_head),
    )
    # .split(2) along dim 0 -> tuple of n_layers tensors, each (2, B, H, P, d_head)
    return tuple(kv[2 * l: 2 * l + 2] for l in range(n_layers))


def init_params(key, prefix_length, input_size, bottleneck_size, n_layers):
    out_dim = n_layers * 2 * input_size
    k = jax.random.split(key, 5)
    return {
        "wte": jax.random.normal(k[0], (prefix_length, input_size), jnp.float32) * 0.02,
        "w1": jax.random.normal(k[1], (input_size, bottleneck_size), jnp.float32)
              * (1.0 / jnp.sqrt(input_size)),
        "b1": jax.random.normal(k[2], (bottleneck_size,), jnp.float32) * 0.01,
        "w2": jax.random.normal(k[3], (bottleneck_size, out_dim), jnp.float32)
              * (1.0 / jnp.sqrt(bottleneck_size)),
        "b2": jax.random.normal(k[4], (out_dim,), jnp.float32) * 0.01,
    }


if __name__ == "__main__":
    # Small config consistent with the module.
    n_layers = 2
    n_heads = 4
    input_size = 32           # hidden size
    prefix_length = 8
    bottleneck_size = 64
    batch_size = 2

    key = jax.random.PRNGKey(0)
    params = init_params(key, prefix_length, input_size, bottleneck_size, n_layers)

    outs = prefix_tuning_forward(batch_size, params, n_layers, n_heads,
                                 input_size, prefix_length)
    outs = jax.block_until_ready(outs)

    # Reference in plain JAX (same math as the PyTorch module in eval mode).
    h_ref = jnp.tanh(params["wte"] @ params["w1"] + params["b1"])
    kv_ref = h_ref @ params["w2"] + params["b2"]
    kv_ref = jnp.broadcast_to(kv_ref[None], (batch_size,) + kv_ref.shape)
    kv_ref = kv_ref.reshape(batch_size, prefix_length, n_layers * 2, n_heads,
                            input_size // n_heads)
    kv_ref = jnp.transpose(kv_ref, (2, 0, 3, 1, 4))
    ref_outs = tuple(kv_ref[2 * l: 2 * l + 2] for l in range(n_layers))

    for a, b in zip(outs, ref_outs):
        assert a.shape == (2, batch_size, n_heads, prefix_length,
                           input_size // n_heads)
        assert jnp.allclose(a, b, atol=1e-5, rtol=1e-5)

    print("KERNEL_OK")
</pallas_src>

<mosaic_0001>
module attributes {stable_mosaic.version = 11 : i64} {
  func.func @_fused_prefix_mlp_kernel(%arg0: i32, %arg1: memref<8x32xf32, #tpu.memory_space<vmem>>, %arg2: memref<32x64xf32, #tpu.memory_space<vmem>>, %arg3: memref<1x64xf32, #tpu.memory_space<vmem>>, %arg4: memref<64x128xf32, #tpu.memory_space<vmem>>, %arg5: memref<1x128xf32, #tpu.memory_space<vmem>>, %arg6: memref<8x128xf32, #tpu.memory_space<vmem>>, %arg7: memref<8x64xf32, #tpu.memory_space<vmem>>) attributes {dimension_semantics = [#tpu.dimension_semantics<arbitrary>], iteration_bounds = array<i64: 1>, scalar_prefetch = 0 : i64, scratch_operands = 1 : i64, tpu.core_type = #tpu.core_type<tc>, window_params = [{pipeline_mode = #tpu.pipeline_mode<synchronous>, transform_indices = @transform_0, window_bounds = array<i64: 8, 32>}, {pipeline_mode = #tpu.pipeline_mode<synchronous>, transform_indices = @transform_1, window_bounds = array<i64: 32, 64>}, {pipeline_mode = #tpu.pipeline_mode<synchronous>, transform_indices = @transform_2, window_bounds = array<i64: 1, 64>}, {transform_indices = @transform_3, window_bounds = array<i64: 64, 128>}, {transform_indices = @transform_4, window_bounds = array<i64: 1, 128>}, {transform_indices = @transform_5, window_bounds = array<i64: 8, 128>}]} {
    %c0_i32 = arith.constant 0 : i32
    %0 = arith.cmpi eq, %arg0, %c0_i32 : i32
    %1 = arith.extui %0 : i1 to i32
    %c0_i32_0 = arith.constant 0 : i32
    %2 = arith.cmpi ne, %1, %c0_i32_0 : i32
    scf.if %2 {
      %c0_8 = arith.constant 0 : index
      %c0_9 = arith.constant 0 : index
      %10 = vector.load %arg1[%c0_8, %c0_9] : memref<8x32xf32, #tpu.memory_space<vmem>>, vector<8x32xf32>
      %c0_10 = arith.constant 0 : index
      %c0_11 = arith.constant 0 : index
      %11 = vector.load %arg2[%c0_10, %c0_11] : memref<32x64xf32, #tpu.memory_space<vmem>>, vector<32x64xf32>
      %cst_12 = arith.constant dense<0.000000e+00> : vector<8x64xf32>
      %12 = tpu.matmul %10, %11, %cst_12 {dimension_numbers = #tpu.dot_dimension_numbers<[1], [0], [0], [1], [0, 0, 1, 1], [], []>} : vector<8x32xf32>, vector<32x64xf32>, vector<8x64xf32> -> vector<8x64xf32>
      %c0_13 = arith.constant 0 : index
      %c0_14 = arith.constant 0 : index
      %13 = vector.load %arg3[%c0_13, %c0_14] : memref<1x64xf32, #tpu.memory_space<vmem>>, vector<1x64xf32>
      %14 = vector.broadcast %13 : vector<1x64xf32> to vector<8x64xf32>
      %15 = arith.addf %12, %14 : vector<8x64xf32>
      %16 = math.tanh %15 : vector<8x64xf32>
      %c0_15 = arith.constant 0 : index
      %c0_16 = arith.constant 0 : index
      %17 = vector.load %arg7[%c0_15, %c0_16] : memref<8x64xf32, #tpu.memory_space<vmem>>, vector<8x64xf32>
      tpu.vector_store %arg7[%c0_15, %c0_16], %16 {strides = array<i32>} : memref<8x64xf32, #tpu.memory_space<vmem>>, vector<8x64xf32>,
    } else {
    }
    %c0 = arith.constant 0 : index
    %c0_1 = arith.constant 0 : index
    %3 = vector.load %arg7[%c0, %c0_1] : memref<8x64xf32, #tpu.memory_space<vmem>>, vector<8x64xf32>
    %c0_2 = arith.constant 0 : index
    %c0_3 = arith.constant 0 : index
    %4 = vector.load %arg4[%c0_2, %c0_3] : memref<64x128xf32, #tpu.memory_space<vmem>>, vector<64x128xf32>
    %cst = arith.constant dense<0.000000e+00> : vector<8x128xf32>
    %5 = tpu.matmul %3, %4, %cst {dimension_numbers = #tpu.dot_dimension_numbers<[1], [0], [0], [1], [0, 0, 1, 1], [], []>} : vector<8x64xf32>, vector<64x128xf32>, vector<8x128xf32> -> vector<8x128xf32>
    %c0_4 = arith.constant 0 : index
    %c0_5 = arith.constant 0 : index
    %6 = vector.load %arg5[%c0_4, %c0_5] : memref<1x128xf32, #tpu.memory_space<vmem>>, vector<1x128xf32>
    %7 = vector.broadcast %6 : vector<1x128xf32> to vector<8x128xf32>
    %8 = arith.addf %5, %7 : vector<8x128xf32>
    %c0_6 = arith.constant 0 : index
    %c0_7 = arith.constant 0 : index
    %9 = vector.load %arg6[%c0_6, %c0_7] : memref<8x128xf32, #tpu.memory_space<vmem>>, vector<8x128xf32>
    tpu.vector_store %arg6[%c0_6, %c0_7], %8 {strides = array<i32>} : memref<8x128xf32, #tpu.memory_space<vmem>>, vector<8x128xf32>,
    return
  }
  func.func @transform_0(%arg0: i32) -> (i32, i32) {
    %c0_i32 = arith.constant 0 : i32
    %c0_i32_0 = arith.constant 0 : i32
    %c0_i32_1 = arith.constant 0 : i32
    return %c0_i32, %c0_i32_0 : i32, i32
  }
  func.func @transform_1(%arg0: i32) -> (i32, i32) {
    %c0_i32 = arith.constant 0 : i32
    %c0_i32_0 = arith.constant 0 : i32
    %c0_i32_1 = arith.constant 0 : i32
    return %c0_i32, %c0_i32_0 : i32, i32
  }
  func.func @transform_2(%arg0: i32) -> (i32, i32) {
    %c0_i32 = arith.constant 0 : i32
    %c0_i32_0 = arith.constant 0 : i32
    %c0_i32_1 = arith.constant 0 : i32
    return %c0_i32, %c0_i32_0 : i32, i32
  }
  func.func @transform_3(%arg0: i32) -> (i32, i32) {
    %c0_i32 = arith.constant 0 : i32
    %c0_i32_0 = arith.constant 0 : i32
    return %c0_i32, %arg0 : i32, i32
  }
  func.func @transform_4(%arg0: i32) -> (i32, i32) {
    %c0_i32 = arith.constant 0 : i32
    %c0_i32_0 = arith.constant 0 : i32
    return %c0_i32, %arg0 : i32, i32
  }
  func.func @transform_5(%arg0: i32) -> (i32, i32) {
    %c0_i32 = arith.constant 0 : i32
    %c0_i32_0 = arith.constant 0 : i32
    return %c0_i32, %arg0 : i32, i32
  }
}

</mosaic_0001>

<llo_original>
// kernel: tpu_custom_call.1
$region0: #{tpu_custom_call.1}
  #allocation0 [shape = 'u32[]', space=smem, size = 0x4, offset = 0x4, fixed_abs, tag = 'smem constant byte address 0x4 - core index']
  #allocation1 [shape = 'u32[72,128]{1,0:T(1,128)}', space=vmem, size = 0x9000, scoped, tag = 'internal scratch']
  #allocation2 [shape = 'f32[8,64]{1,0:T(8,128)}', space=vmem, size = 0x1000, scoped, tag = 'scratch operand']
  %s0 = inlined_call_operand.hbm [shape: f32[8,32], index: 0, kind: input, shape index: {}]
  %s1 = inlined_call_operand.hbm [shape: f32[32,64], index: 1, kind: input, shape index: {}]
  %s2 = inlined_call_operand.vmem [shape: f32[1,64], index: 2, kind: input, shape index: {}]
  %s3 = inlined_call_operand.hbm [shape: f32[64,128], index: 3, kind: input, shape index: {}]
  %s4 = inlined_call_operand.vmem [shape: f32[1,128], index: 4, kind: input, shape index: {}]
  %s5 = inlined_call_operand.hbm [shape: f32[8,128], index: 5, kind: output, shape index: {}]
  %s6 = sld [smem:[#allocation0]]
  $region46: #{tpu_custom_call.1} parent=0
    _
  %s8 = ssub.s32 1, %s6
  %s9 = scalar_select 0, %s8, %s6
  $region1: #{tpu_custom_call.1} parent=0
    #allocation3 [shape = 'u8[4096]{0}', space=vmem, size = 0x1000, scoped, tag = 'input window, operand 0, single buffered']
    #allocation4 [shape = 's32[1]{0}', space=sflag, size = 0x4, scoped, tag = 'scoped memory for tpu_custom_call.1']
    #allocation5 [shape = 's32[1]{0}', space=sflag, size = 0x4, scoped, tag = 'scoped memory for tpu_custom_call.1']
    #allocation6 [shape = 'u8[16384]{0}', space=vmem, size = 0x4000, scoped, tag = 'input window, operand 1, single buffered']
    #allocation7 [shape = 's32[1]{0}', space=sflag, size = 0x4, scoped, tag = 'scoped memory for tpu_custom_call.1']
    #allocation8 [shape = 'u8[32768]{0}', space=vmem, size = 0x8000, scoped, tag = 'input window, operand 3, single buffered']
    #allocation9 [shape = 'u8[4096]{0}', space=vmem, size = 0x1000, scoped, tag = 'output window, operand 0, single buffered']
    %10 = vsyncpa [#allocation4], 0
    %11 = vsyncpa [#allocation7], 0
    %12 = vsyncpa [#allocation5], 0
    // Predicated region
    $region2: #{tpu_custom_call.1} parent=1 // pred_check
      _
    $region3: #{tpu_custom_call.1} parent=1 // pred_check_branch
      %14 = sbr.rel (0) target = $region5
    $region4: #{tpu_custom_call.1} parent=1 // pred_region
      %16 = vsyncadd [#allocation4], 0
      %s18 = sshll.u32 %s0, 4
      %s19 = int_to_ptr.hbm [resolvable:$true] %s18
      %s20 = sshll.u32 [#allocation3], 4
      %s21 = int_to_ptr.vmem [resolvable:$true] %s20
      %23 = dma.hbm_to_vmem [thread:$0]  %s19, 128, %s21, [#allocation4]
    $region5: #{tpu_custom_call.1} parent=1 // pred_fallthru
      _
    // Predicated region
    $region6: #{tpu_custom_call.1} parent=1 // pred_check
      _
    $region7: #{tpu_custom_call.1} parent=1 // pred_check_branch
      %25 = sbr.rel (0) target = $region9
    $region8: #{tpu_custom_call.1} parent=1 // pred_region
      %27 = vsyncadd [#allocation7], 0
      %s28 = sshll.u32 %s1, 4
      %s29 = int_to_ptr.hbm [resolvable:$true] %s28
      %s30 = sshll.u32 [#allocation6], 4
      %s31 = int_to_ptr.vmem [resolvable:$true] %s30
      %36 = dma.hbm_to_vmem [thread:$0]  %s29, 512, %s31, [#allocation7], 128, 128, 8
    $region9: #{tpu_custom_call.1} parent=1 // pred_fallthru
      _
    // Predicated region
    $region10: #{tpu_custom_call.1} parent=1 // pred_check
      _
    $region11: #{tpu_custom_call.1} parent=1 // pred_check_branch
      %38 = sbr.rel (0) target = $region13
    $region12: #{tpu_custom_call.1} parent=1 // pred_region
      _
    $region13: #{tpu_custom_call.1} parent=1 // pred_fallthru
      _
    // Predicated region
    $region14: #{tpu_custom_call.1} parent=1 // pred_check
      _
    $region15: #{tpu_custom_call.1} parent=1 // pred_check_branch
      %40 = sbr.rel (0) target = $region17
    $region16: #{tpu_custom_call.1} parent=1 // pred_region
      %42 = vsyncadd [#allocation7], 0
      %s43 = sshll.u32 %s3, 4
      %s44 = int_to_ptr.hbm [resolvable:$true] %s43
      %s45 = sshll.u32 [#allocation8], 4
      %s46 = int_to_ptr.vmem [resolvable:$true] %s45
      %51 = dma.hbm_to_vmem [thread:$0]  %s44, 1024, %s46, [#allocation7], 128, 128, 8
    $region17: #{tpu_custom_call.1} parent=1 // pred_fallthru
      _
    // Predicated region
    $region18: #{tpu_custom_call.1} parent=1 // pred_check
      _
    $region19: #{tpu_custom_call.1} parent=1 // pred_check_branch
      %53 = sbr.rel (0) target = $region21
    $region20: #{tpu_custom_call.1} parent=1 // pred_region
      _
    $region21: #{tpu_custom_call.1} parent=1 // pred_fallthru
      _
    // Predicated region
    $region22: #{tpu_custom_call.1} parent=1 // pred_check
      _
    $region23: #{tpu_custom_call.1} parent=1 // pred_check_branch
      %55 = sbr.rel (0) target = $region25
    $region24: #{tpu_custom_call.1} parent=1 // pred_region
      %57 = dma.done [#allocation4], 128
    $region25: #{tpu_custom_call.1} parent=1 // pred_fallthru
      _
    // Predicated region
    $region26: #{tpu_custom_call.1} parent=1 // pred_check
      _
    $region27: #{tpu_custom_call.1} parent=1 // pred_check_branch
      %59 = sbr.rel (0) target = $region29
    $region28: #{tpu_custom_call.1} parent=1 // pred_region
      %61 = dma.done [#allocation7], 512
    $region29: #{tpu_custom_call.1} parent=1 // pred_fallthru
      _
    // Predicated region
    $region30: #{tpu_custom_call.1} parent=1 // pred_check
      _
    $region31: #{tpu_custom_call.1} parent=1 // pred_check_branch
      %63 = sbr.rel (0) target = $region33
    $region32: #{tpu_custom_call.1} parent=1 // pred_region
      %65 = dma.done [#allocation7], 1024
    $region33: #{tpu_custom_call.1} parent=1 // pred_fallthru
      _
    %p66 = scmp.eq.s32.totalorder 0, 0
    // Predicated region
    $region34: #{tpu_custom_call.1} parent=1 // pred_check
      %p67 = pneg %p66
    $region35: #{tpu_custom_call.1} parent=1 // pred_check_branch
      %69 = sbr.rel (%p67) target = $region37
    $region36: #{tpu_custom_call.1} parent=1 // pred_region
      %v70 = vld [vmem:[#allocation3] sm:$0xff]
      %v71 = vld [vmem:[#allocation6] sm:$0xff]
      %v72 = vld [vmem:[#allocation6 + $0x8] sm:$0xff]
      %v73 = vld [vmem:[#allocation6 + $0x10] sm:$0xff]
      %v74 = vld [vmem:[#allocation6 + $0x18] sm:$0xff]
      %v75 = vld [vmem:[%s2] sm:$0x1]
      %v77 = vperm.slane %v75, 0
      %vm79 = vcmask 261120
      %v81 = vsel %vm79, %v70, 0
      %83 = vmatpush.msra.mxu0 0.0
      %84 = vmatpush.msra.mxu0 0.0
      %85 = vmatpush.msra.mxu0 0.0
      %86 = vmatpush.msra.mxu0 0.0
      %87 = vmatpush.msra.mxu0 0.0
      %88 = vmatpush.msra.mxu0 0.0
      %89 = vmatpush.msra.mxu0 0.0
      %90 = vmatpush.msra.mxu0 0.0
      %91 = vmatpush.msra.mxu0 0.0
      %92 = vmatpush.msra.mxu0 0.0
      %93 = vmatpush.msra.mxu0 0.0
      %94 = vmatpush.msra.mxu0 0.0
      %95 = vmatpush.msra.mxu0 %v74
      %96 = vmatpush.msra.mxu0 %v73
      %97 = vmatpush.msra.mxu0 %v72
      %98 = vmatpush.msra.mxu0 %v71
      %99 = vmatmul.f32.gmra.mxu0 %v81
      %v100 = vpop.f32.mrf.mxu0
      %v101 = vadd.f32 %v77, %v100
      %102 = vdwg.mxu0
      %v103 = vtanh.pop %v101
      %vm104 = vcmask 523264
      %105 = vst.msk [vmem:[#allocation2] sm:$0xff] %vm104, %v103
    $region37: #{tpu_custom_call.1} parent=1 // pred_fallthru
      _
    %v106 = vld [vmem:[#allocation2] sm:$0xff]
    %v107 = vld [vmem:[#allocation8] sm:$0xff]
    %v108 = vld [vmem:[#allocation8 + $0x8] sm:$0xff]
    %v109 = vld [vmem:[#allocation8 + $0x10] sm:$0xff]
    %v110 = vld [vmem:[#allocation8 + $0x18] sm:$0xff]
    %v111 = vld [vmem:[#allocation8 + $0x20] sm:$0xff]
    %v112 = vld [vmem:[#allocation8 + $0x28] sm:$0xff]
    %v113 = vld [vmem:[#allocation8 + $0x30] sm:$0xff]
    %v114 = vld [vmem:[#allocation8 + $0x38] sm:$0xff]
    %v115 = vld [vmem:[%s4] sm:$0x1]
    %v117 = vperm.slane %v115, 0
    %vm119 = vcmask 523264
    %v121 = vsel %vm119, %v106, 0
    %123 = vmatpush.msra.mxu0 0.0
    %124 = vmatpush.msra.mxu0 0.0
    %125 = vmatpush.msra.mxu0 0.0
    %126 = vmatpush.msra.mxu0 0.0
    %127 = vmatpush.msra.mxu0 0.0
    %128 = vmatpush.msra.mxu0 0.0
    %129 = vmatpush.msra.mxu0 0.0
    %130 = vmatpush.msra.mxu0 0.0
    %131 = vmatpush.msra.mxu0 %v114
    %132 = vmatpush.msra.mxu0 %v113
    %133 = vmatpush.msra.mxu0 %v112
    %134 = vmatpush.msra.mxu0 %v111
    %135 = vmatpush.msra.mxu0 %v110
    %136 = vmatpush.msra.mxu0 %v109
    %137 = vmatpush.msra.mxu0 %v108
    %138 = vmatpush.msra.mxu0 %v107
    %139 = vmatmul.f32.gmra.mxu0 %v121
    %v140 = vpop.f32.mrf.mxu0
    %v141 = vadd.f32 %v117, %v140
    %142 = vdwg.mxu0
    %143 = vst [vmem:[#allocation9] sm:$0xff] %v141
    // Predicated region
    $region38: #{tpu_custom_call.1} parent=1 // pred_check
      _
    $region39: #{tpu_custom_call.1} parent=1 // pred_check_branch
      %145 = sbr.rel (0) target = $region41
    $region40: #{tpu_custom_call.1} parent=1 // pred_region
      %147 = vsyncadd [#allocation5], 0
      %s149 = sshll.u32 [#allocation9], 4
      %s150 = int_to_ptr.vmem [resolvable:$true] %s149
      %s151 = sshll.u32 %s5, 4
      %s152 = int_to_ptr.hbm [resolvable:$true] %s151
      %154 = dma.vmem_to_hbm [thread:$0]  %s150, 128, %s152, [#allocation5]
    $region41: #{tpu_custom_call.1} parent=1 // pred_fallthru
      _
    // Predicated region
    $region42: #{tpu_custom_call.1} parent=1 // pred_check
      _
    $region43: #{tpu_custom_call.1} parent=1 // pred_check_branch
      %156 = sbr.rel (0) target = $region45
    $region44: #{tpu_custom_call.1} parent=1 // pred_region
      %158 = dma.done [#allocation5], 128
    $region45: #{tpu_custom_call.1} parent=1 // pred_fallthru
      _
    %159 = vsyncpa [#allocation4], 1
    %160 = vsyncpa [#allocation7], 1
    %161 = vsyncpa [#allocation5], 1

</llo_original>
